<compile_context>
chip_gen: v5e
topology: v5e:2x2
jax: 0.10.0
libtpu: 0.0.40
codegen_flags: <defaults>
</compile_context>

<pallas_src>
import functools

import numpy as np
import jax
import jax.numpy as jnp
from jax.experimental import pallas as pl
from jax.experimental.pallas import tpu as pltpu

# ---- cargan constants, scaled down to SMALL synthetic sizes -----------------
NUM_FFT = 64              # cargan.NUM_FFT   (1024 in the real repo)
HOPSIZE = NUM_FFT // 4    # cargan.HOPSIZE   (== torch.stft default hop)
SAMPLE_RATE = 16000       # cargan.SAMPLE_RATE
NUM_MELS = 16             # cargan.NUM_MELS
N_FREQ = NUM_FFT // 2 + 1
N_FREQ_PAD = ((N_FREQ + 7) // 8) * 8   # sublane-aligned padded freq count


# ---- deterministic parameter construction (replaces librosa / torch buffers) -
def _hann_window(n):
    # torch.hann_window(n) is periodic: 0.5*(1 - cos(2*pi*k/n))
    k = np.arange(n)
    return (0.5 * (1.0 - np.cos(2.0 * np.pi * k / n))).astype(np.float32)


def _mel_filterbank(sr, n_fft, n_mels):
    # librosa.filters.mel defaults: Slaney mel scale, norm='slaney'.
    # TODO(synk): exact librosa bit-match not guaranteed (float64 vs float32 path).
    n_freq = n_fft // 2 + 1
    f_sp = 200.0 / 3.0
    min_log_hz = 1000.0
    min_log_mel = min_log_hz / f_sp
    logstep = np.log(6.4) / 27.0

    def hz_to_mel(f):
        f = np.asarray(f, dtype=np.float64)
        lin = f / f_sp
        log = min_log_mel + np.log(np.maximum(f, 1e-10) / min_log_hz) / logstep
        return np.where(f >= min_log_hz, log, lin)

    def mel_to_hz(m):
        m = np.asarray(m, dtype=np.float64)
        lin = f_sp * m
        log = min_log_hz * np.exp(logstep * (m - min_log_mel))
        return np.where(m >= min_log_mel, log, lin)

    mel_pts = np.linspace(0.0, float(hz_to_mel(sr / 2.0)), n_mels + 2)
    hz_pts = mel_to_hz(mel_pts)
    fft_freqs = np.linspace(0.0, sr / 2.0, n_freq)
    weights = np.zeros((n_mels, n_freq), dtype=np.float64)
    for m in range(n_mels):
        lower = (fft_freqs - hz_pts[m]) / max(hz_pts[m + 1] - hz_pts[m], 1e-8)
        upper = (hz_pts[m + 2] - fft_freqs) / max(hz_pts[m + 2] - hz_pts[m + 1], 1e-8)
        weights[m] = np.maximum(0.0, np.minimum(lower, upper))
    # Slaney area normalization
    enorm = 2.0 / (hz_pts[2:n_mels + 2] - hz_pts[:n_mels])
    weights *= enorm[:, None]
    return weights.astype(np.float32)


def _dft_mel_constants(dft_dtype):
    """Windowed real-DFT matrix (re|im stacked, sublane-padded) + padded mel basis."""
    window = _hann_window(NUM_FFT)                              # (NUM_FFT,)
    k = np.arange(N_FREQ)[:, None].astype(np.float64)
    n = np.arange(NUM_FFT)[None, :].astype(np.float64)
    ang = 2.0 * np.pi * k * n / NUM_FFT
    cos_w = (np.cos(ang) * window[None, :]).astype(np.float32)   # (N_FREQ, NUM_FFT)
    sin_w = (-np.sin(ang) * window[None, :]).astype(np.float32)  # (N_FREQ, NUM_FFT)

    cs = np.zeros((2 * N_FREQ_PAD, NUM_FFT), dtype=np.float32)
    cs[:N_FREQ] = cos_w
    cs[N_FREQ_PAD:N_FREQ_PAD + N_FREQ] = sin_w

    mb = np.zeros((NUM_MELS, N_FREQ_PAD), dtype=np.float32)
    # NOTE: columns >= N_FREQ stay zero so padded spectrum rows (sqrt(1e-9)) never
    # leak into the mel output -- keep this invariant if the padding changes.
    mb[:, :N_FREQ] = _mel_filterbank(SAMPLE_RATE, NUM_FFT, NUM_MELS)
    return cs.astype(dft_dtype), mb


# ---- Pallas kernel -----------------------------------------------------------
def _logmel_kernel(c0_ref, c1_ref, cs_ref, mb_ref, out_ref, *, tm, hop, ratio,
                   n_freq_pad):
    # c0_ref: (1, hop, tm)  -- chunk block j of the chunked audio.
    # c1_ref: (1, hop, 128) -- first 128 chunks of block j+1 (only ratio-1 used).
    # cs_ref: (2*N_FREQ_PAD, NUM_FFT) windowed [cos ; -sin] DFT matrix.
    # mb_ref: (NUM_MELS, N_FREQ_PAD) zero-padded mel basis.
    # out_ref: (1, NUM_MELS, tm) lane-dense output tile.
    a0 = c0_ref[0]                                   # (hop, tm)
    a1 = c1_ref[0]                                   # (hop, 128)
    win = jnp.concatenate([a0, a1], axis=1)          # (hop, tm + 128)
    win = win.astype(cs_ref.dtype)                   # optional bf16 DFT path

    # win[r, c] == padded[(tile_start + c)*hop + r]; frame t, tap n = q*hop + r
    # reads padded[(tile_start + t + q)*hop + r] == win[r, t + q].
    if hop >= 128:
        # Split-K accumulation (real cargan sizes): no (NUM_FFT, tm) frames
        # buffer is materialized; each K=hop sub-matmul still fills the MXU.
        reim = jnp.zeros((2 * n_freq_pad, tm), dtype=jnp.float32)
        for q in range(ratio):
            reim = reim + jnp.dot(cs_ref[:, q * hop:(q + 1) * hop],
                                  win[:, q:q + tm],
                                  preferred_element_type=jnp.float32)
    else:
        # Toy config (hop < 128): fused single matmul keeps the MXU fed.
        frames_t = jnp.concatenate([win[:, q:q + tm] for q in range(ratio)],
                                   axis=0)           # (NUM_FFT, tm)
        reim = jnp.dot(cs_ref[...], frames_t,
                       preferred_element_type=jnp.float32)

    re = reim[:n_freq_pad, :]
    im = reim[n_freq_pad:, :]
    spec = jnp.sqrt(re * re + im * im + 1e-9)        # (N_FREQ_PAD, tm)

    # Mel projection (MXU, f32) -> lane-dense (NUM_MELS, tm) tile.
    mel = jnp.dot(mb_ref[...], spec, preferred_element_type=jnp.float32)
    out_ref[0] = jnp.log10(jnp.maximum(mel, 1e-5))


# ---- wrapper -----------------------------------------------------------------
def mel_spectrogram(audio, *, frame_tile=128, vmem_limit_bytes=48 * 1024 * 1024,
                    dft_dtype=jnp.float32):
    """JAX/Pallas equivalent of MelSpectrogram.forward.

    audio: (T,) or (B, T) float32.  Returns (B, NUM_MELS, n_frames) float32.

    frame_tile: frames per grid step (multiple of 128).  128 suits the small
      synthetic sizes.  At real cargan sizes (NUM_FFT=1024, hop=256):
        * v6e / v5e (128 MiB VMEM): frame_tile 512-1024, vmem_limit_bytes up to
          64-96 MiB (v5e's 16 MiB default scoped limit means it MUST stay set).
        * v7x (64 MiB VMEM, 32 MiB default scoped): cap frame_tile around 512
          and keep vmem_limit_bytes <= ~40-48 MiB; single-buffered constants +
          the narrowed neighbor block are what make 512 fit.  Keep B*n_tiles
          comfortably > 2 so the 2 TCs stay balanced.
    dft_dtype: dtype of the DFT weight matrix (and the audio tile fed to the
      DFT matmul).  jnp.bfloat16 roughly doubles MXU rate on v6e/v7x with f32
      accumulation, but changes numerics.
      # TODO(synk): validate bf16 DFT weights against the torch reference
      # before enabling it by default.
    """
    assert frame_tile % 128 == 0, "frame_tile must be a multiple of 128"
    if audio.ndim == 1:
        audio = audio[None, :]
    assert audio.ndim == 2
    audio = audio.astype(jnp.float32)
    B, _ = audio.shape

    # reflect padding (matches torch.nn.functional.pad(..., 'reflect'))
    p = (NUM_FFT - HOPSIZE) // 2
    padded = jnp.pad(audio, ((0, 0), (p, p)), mode="reflect")
    L = padded.shape[1]

    hop = NUM_FFT // 4                      # torch.stft default hop == HOPSIZE
    ratio = NUM_FFT // hop                  # 4 : frame overlap factor
    n_frames = (L - NUM_FFT) // hop + 1     # torch.stft, center=False

    tm = frame_tile
    n_tiles = -(-n_frames // tm)
    n_frames_pad = n_tiles * tm
    # One extra tm-wide chunk block so the 128-wide "j+1" neighbor block is
    # always in-bounds (tm >= 128).
    n_chunks_pad = (n_tiles + 1) * tm
    total_samples = n_chunks_pad * hop
    padded = jnp.pad(padded, ((0, 0), (0, total_samples - L)))
    # Chunked audio, chunk index on the LANE axis:
    #   chunked[b, r, c] = padded[b, c*hop + r]
    # This reshape+transpose is one extra XLA HBM pass over the padded audio
    # before the kernel runs; accepted as known cost (it avoids the 4x
    # overlapping-frame materialization inside or outside the kernel).
    chunked = padded.reshape(B, n_chunks_pad, hop).transpose(0, 2, 1)

    cs_np, mb_np = _dft_mel_constants(dft_dtype)
    cs = jnp.asarray(cs_np)                 # (2*N_FREQ_PAD, NUM_FFT), dft_dtype
    mb = jnp.asarray(mb_np)                 # (NUM_MELS, N_FREQ_PAD), f32

    m_rows = B * n_frames_pad
    audio_bytes = B * n_tiles * hop * (tm + 128) * 4      # main + narrowed neighbor
    const_bytes = int(cs.size) * cs.dtype.itemsize + int(mb.size) * 4
    out_bytes = B * NUM_MELS * n_frames_pad * 4
    cost = pl.CostEstimate(
        flops=2 * m_rows * NUM_FFT * (2 * N_FREQ_PAD)
              + 2 * m_rows * N_FREQ_PAD * NUM_MELS,
        transcendentals=m_rows * (N_FREQ_PAD + NUM_MELS),
        bytes_accessed=audio_bytes + const_bytes + out_bytes,
    )

    blocks_per_tile = tm // 128
    kernel = functools.partial(_logmel_kernel, tm=tm, hop=hop, ratio=ratio,
                               n_freq_pad=N_FREQ_PAD)
    out = pl.pallas_call(
        kernel,
        out_shape=jax.ShapeDtypeStruct((B, NUM_MELS, n_frames_pad), jnp.float32),
        grid=(B, n_tiles),
        in_specs=[
            # chunk block j (double-buffered by default)
            pl.BlockSpec((1, hop, tm), lambda b, j: (b, 0, j)),
            # narrowed neighbor: first 128 chunks of block j+1
            pl.BlockSpec((1, hop, 128),
                         lambda b, j: (b, 0, (j + 1) * blocks_per_tile)),
            # grid-invariant constants: single-buffered (no re-DMA, no 2x VMEM)
            pl.BlockSpec((2 * N_FREQ_PAD, NUM_FFT), lambda b, j: (0, 0),
                         pipeline_mode=pl.Buffered(1)),
            pl.BlockSpec((NUM_MELS, N_FREQ_PAD), lambda b, j: (0, 0),
                         pipeline_mode=pl.Buffered(1)),
        ],
        out_specs=pl.BlockSpec((1, NUM_MELS, tm), lambda b, j: (b, 0, j)),
        compiler_params=pltpu.CompilerParams(
            dimension_semantics=("parallel", "parallel"),
            vmem_limit_bytes=vmem_limit_bytes,
        ),
        cost_estimate=cost,
    )(chunked, chunked, cs, mb)

    # Drop padded frames; layout already matches torch's (B, NUM_MELS, n_frames).
    return out[:, :, :n_frames]


if __name__ == "__main__":
    key = jax.random.PRNGKey(0)
    B, T = 2, 256  # small: T // HOPSIZE == 16 frames
    audio = jax.random.normal(key, (B, T), dtype=jnp.float32)

    mels = mel_spectrogram(audio)
    jax.block_until_ready(mels)

    n_frames_expected = T // HOPSIZE
    assert mels.shape == (B, NUM_MELS, n_frames_expected), mels.shape
    assert mels.dtype == jnp.float32
    assert bool(jnp.all(jnp.isfinite(mels)))
    print("KERNEL_OK")
</pallas_src>

<mosaic_0001>
module attributes {stable_mosaic.version = 11 : i64} {
  func.func @_logmel_kernel(%arg0: i32, %arg1: i32, %arg2: memref<1x16x128xf32, #tpu.memory_space<vmem>>, %arg3: memref<1x16x128xf32, #tpu.memory_space<vmem>>, %arg4: memref<80x64xf32, #tpu.memory_space<vmem>>, %arg5: memref<16x40xf32, #tpu.memory_space<vmem>>, %arg6: memref<1x16x128xf32, #tpu.memory_space<vmem>>) attributes {dimension_semantics = [#tpu.dimension_semantics<parallel>, #tpu.dimension_semantics<parallel>], iteration_bounds = array<i64: 2, 1>, scalar_prefetch = 0 : i64, scratch_operands = 0 : i64, tpu.core_type = #tpu.core_type<tc>, window_params = [{transform_indices = @transform_0, window_bounds = array<i64: 1, 16, 128>}, {transform_indices = @transform_1, window_bounds = array<i64: 1, 16, 128>}, {pipeline_mode = #tpu.pipeline_mode<synchronous>, transform_indices = @transform_2, window_bounds = array<i64: 80, 64>}, {pipeline_mode = #tpu.pipeline_mode<synchronous>, transform_indices = @transform_3, window_bounds = array<i64: 16, 40>}, {transform_indices = @transform_4, window_bounds = array<i64: 1, 16, 128>}]} {
    %c0 = arith.constant 0 : index
    %c0_0 = arith.constant 0 : index
    %c0_1 = arith.constant 0 : index
    %0 = vector.load %arg2[%c0, %c0_0, %c0_1] : memref<1x16x128xf32, #tpu.memory_space<vmem>>, vector<1x16x128xf32>
    %1 = vector.shape_cast %0 : vector<1x16x128xf32> to vector<16x128xf32>
    %c0_2 = arith.constant 0 : index
    %c0_3 = arith.constant 0 : index
    %c0_4 = arith.constant 0 : index
    %2 = vector.load %arg3[%c0_2, %c0_3, %c0_4] : memref<1x16x128xf32, #tpu.memory_space<vmem>>, vector<1x16x128xf32>
    %3 = vector.shape_cast %2 : vector<1x16x128xf32> to vector<16x128xf32>
    %4 = tpu.concatenate %1, %3 in 1 : vector<16x128xf32>, vector<16x128xf32> -> vector<16x256xf32>
    %5 = vector.extract_strided_slice %4 {offsets = [0, 0], sizes = [16, 128], strides = [1, 1]} : vector<16x256xf32> to vector<16x128xf32>
    %6 = vector.extract_strided_slice %4 {offsets = [0, 1], sizes = [16, 128], strides = [1, 1]} : vector<16x256xf32> to vector<16x128xf32>
    %7 = vector.extract_strided_slice %4 {offsets = [0, 2], sizes = [16, 128], strides = [1, 1]} : vector<16x256xf32> to vector<16x128xf32>
    %8 = vector.extract_strided_slice %4 {offsets = [0, 3], sizes = [16, 128], strides = [1, 1]} : vector<16x256xf32> to vector<16x128xf32>
    %9 = tpu.concatenate %5, %6, %7, %8 in 0 : vector<16x128xf32>, vector<16x128xf32>, vector<16x128xf32>, vector<16x128xf32> -> vector<64x128xf32>
    %c0_5 = arith.constant 0 : index
    %c0_6 = arith.constant 0 : index
    %10 = vector.load %arg4[%c0_5, %c0_6] : memref<80x64xf32, #tpu.memory_space<vmem>>, vector<80x64xf32>
    %cst = arith.constant dense<0.000000e+00> : vector<80x128xf32>
    %11 = tpu.matmul %10, %9, %cst {dimension_numbers = #tpu.dot_dimension_numbers<[1], [0], [0], [1], [0, 0, 1, 1], [], []>} : vector<80x64xf32>, vector<64x128xf32>, vector<80x128xf32> -> vector<80x128xf32>
    %12 = vector.extract_strided_slice %11 {offsets = [0, 0], sizes = [40, 128], strides = [1, 1]} : vector<80x128xf32> to vector<40x128xf32>
    %13 = vector.extract_strided_slice %11 {offsets = [40, 0], sizes = [40, 128], strides = [1, 1]} : vector<80x128xf32> to vector<40x128xf32>
    %14 = arith.mulf %12, %12 : vector<40x128xf32>
    %15 = arith.mulf %13, %13 : vector<40x128xf32>
    %16 = arith.addf %14, %15 : vector<40x128xf32>
    %cst_7 = arith.constant 9.99999971E-10 : f32
    %17 = vector.broadcast %cst_7 : f32 to vector<40x128xf32>
    %18 = arith.addf %16, %17 : vector<40x128xf32>
    %19 = math.sqrt %18 : vector<40x128xf32>
    %c0_8 = arith.constant 0 : index
    %c0_9 = arith.constant 0 : index
    %20 = vector.load %arg5[%c0_8, %c0_9] : memref<16x40xf32, #tpu.memory_space<vmem>>, vector<16x40xf32>
    %cst_10 = arith.constant dense<0.000000e+00> : vector<16x128xf32>
    %21 = tpu.matmul %20, %19, %cst_10 {dimension_numbers = #tpu.dot_dimension_numbers<[1], [0], [0], [1], [0, 0, 1, 1], [], []>} : vector<16x40xf32>, vector<40x128xf32>, vector<16x128xf32> -> vector<16x128xf32>
    %cst_11 = arith.constant 9.99999974E-6 : f32
    %22 = vector.broadcast %cst_11 : f32 to vector<16x128xf32>
    %23 = arith.maximumf %21, %22 : vector<16x128xf32>
    %24 = math.log %23 : vector<16x128xf32>
    %cst_12 = arith.constant 0.434294492 : f32
    %25 = vector.broadcast %cst_12 : f32 to vector<16x128xf32>
    %26 = arith.mulf %24, %25 : vector<16x128xf32>
    %c0_13 = arith.constant 0 : index
    %c0_14 = arith.constant 0 : index
    %c0_15 = arith.constant 0 : index
    %27 = vector.load %arg6[%c0_13, %c0_14, %c0_15] : memref<1x16x128xf32, #tpu.memory_space<vmem>>, vector<1x16x128xf32>
    %28 = vector.shape_cast %27 : vector<1x16x128xf32> to vector<16x128xf32>
    %29 = vector.shape_cast %26 : vector<16x128xf32> to vector<1x16x128xf32>
    tpu.vector_store %arg6[%c0_13, %c0_14, %c0_15], %29 {strides = array<i32>} : memref<1x16x128xf32, #tpu.memory_space<vmem>>, vector<1x16x128xf32>,
    return
  }
  func.func @transform_0(%arg0: i32, %arg1: i32) -> (i32, i32, i32) {
    %c0_i32 = arith.constant 0 : i32
    %c0_i32_0 = arith.constant 0 : i32
    return %arg0, %c0_i32, %arg1 : i32, i32, i32
  }
  func.func @transform_1(%arg0: i32, %arg1: i32) -> (i32, i32, i32) {
    %c1_i32 = arith.constant 1 : i32
    %0 = arith.addi %arg1, %c1_i32 : i32
    %c1_i32_0 = arith.constant 1 : i32
    %1 = arith.muli %0, %c1_i32_0 : i32
    %c0_i32 = arith.constant 0 : i32
    %c0_i32_1 = arith.constant 0 : i32
    return %arg0, %c0_i32, %1 : i32, i32, i32
  }
  func.func @transform_2(%arg0: i32, %arg1: i32) -> (i32, i32) {
    %c0_i32 = arith.constant 0 : i32
    %c0_i32_0 = arith.constant 0 : i32
    %c0_i32_1 = arith.constant 0 : i32
    return %c0_i32, %c0_i32_0 : i32, i32
  }
  func.func @transform_3(%arg0: i32, %arg1: i32) -> (i32, i32) {
    %c0_i32 = arith.constant 0 : i32
    %c0_i32_0 = arith.constant 0 : i32
    %c0_i32_1 = arith.constant 0 : i32
    return %c0_i32, %c0_i32_0 : i32, i32
  }
  func.func @transform_4(%arg0: i32, %arg1: i32) -> (i32, i32, i32) {
    %c0_i32 = arith.constant 0 : i32
    %c0_i32_0 = arith.constant 0 : i32
    return %arg0, %c0_i32, %arg1 : i32, i32, i32
  }
}

</mosaic_0001>

<llo_original>
// kernel: tpu_custom_call.1
$region0: #{tpu_custom_call.1}
  #allocation0 [shape = 'u32[]', space=smem, size = 0x4, offset = 0x4, fixed_abs, tag = 'smem constant byte address 0x4 - core index']
  #allocation1 [shape = 'u32[72,128]{1,0:T(1,128)}', space=vmem, size = 0x9000, scoped, tag = 'internal scratch']
  %s0 = inlined_call_operand.vmem [shape: f32[2,16,256], index: 0, kind: input, shape index: {}]
  %s1 = inlined_call_operand.vmem [shape: f32[2,16,256], index: 1, kind: input, shape index: {}]
  %s2 = inlined_call_operand.vmem [shape: f32[80,64], index: 2, kind: input, shape index: {}]
  %s3 = inlined_call_operand.vmem [shape: f32[16,40], index: 3, kind: input, shape index: {}]
  %s4 = inlined_call_operand.hbm [shape: f32[2,16,128], index: 4, kind: output, shape index: {}]
  %s5 = sld [smem:[#allocation0]]
  $region125: #{tpu_custom_call.1} parent=0
    _
  %s7 = ssub.s32 1, %s5
  %s8 = scalar_select 0, %s7, %s5
  $region1: #{tpu_custom_call.1} parent=0
    #allocation2 [shape = 'u8[16384]{0}', space=vmem, size = 0x4000, scoped, tag = 'input window, operand 0']
    #allocation3 [shape = 'u8[16384]{0}', space=vmem, size = 0x4000, scoped, tag = 'input window, operand 1']
    #allocation4 [shape = 'u8[16384]{0}', space=vmem, size = 0x4000, scoped, tag = 'output window, operand 0']
    #allocation5 [shape = 's32[2]{0}', space=sflag, size = 0x8, scoped, tag = 'scoped memory for tpu_custom_call.1']
    %9 = vsyncpa [#allocation5], 0
    %s10 = scalar_lea.sflag [#allocation5], 1
    %11 = vsyncpa %s10, 0
    loop: start=0, step=1, limit=4
    $region2: #{tpu_custom_call.1} parent=1 // loop_pre_header
      _
    $region3: #{tpu_custom_call.1} parent=1 // loop_header
      %s13 = sphi 0, %s17
      %p14 = scmp.ge.s32.totalorder %s13, 4
      %s20 = sphi 0, %s32
      %s21 = sphi 0, %s28
      %s22 = sphi 0, %s20
      %s23 = sphi 0, %s21
      %s24 = sphi 0, %s22
      %s25 = sphi 0, %s23
      %s37 = sphi 0, %s39
      %s40 = sphi 0, %s37
      %s41 = sphi 0, %s40
      %s57 = sphi 0, %s41
      %s67 = sphi 0, %s69
      %s70 = sphi 0, %s67
      %s71 = sphi 0, %s70
      %s87 = sphi 0, %s71
      %s91 = sphi 0, %s91
      %s93 = sphi 0, %s91
      %s94 = sphi 0, %s93
      %s108 = sphi 0, %s94
      %s112 = sphi 0, %s112
      %s114 = sphi 0, %s112
      %s115 = sphi 0, %s114
      %s129 = sphi 0, %s115
      %s137 = sphi 0, %s139
      %s140 = sphi 0, %s137
      %s141 = sphi 0, %s140
      %s157 = sphi 0, %s141
    $region4: #{tpu_custom_call.1} parent=1 // loop_header_branch
      %16 = sbr.rel (%p14) target = $region8
    $region5: #{tpu_custom_call.1} parent=1 // loop_body
      %s18 = ssub.s32 %s13, 1
      %s19 = ssub.s32 %s13, 2
      %s26 = sadd.s32 1, %s21
      %p27 = scmp.ge.s32.totalorder %s26, 1
      %s28 = scalar_select %p27, 0, %s26
      %s29 = sadd.s32 1, %s20
      %s30 = scalar_select %p27, %s29, %s20
      %p31 = scmp.ge.s32.totalorder %s30, 2
      %s32 = scalar_select %p31, 0, %s30
      %s33 = ssub.s32 %s20, %s32
      %s34 = ssub.s32 %s21, %s28
      %s35 = sor.u32 %s33, %s34
      %p36 = scmp.eq.s32.totalorder %s35, 0
      %s38 = sadd.s32 %s37, 1
      %s39 = scalar_select %p36, %s37, %s38
      %p42 = pneg %p36
      %p43 = scmp.eq.s32.totalorder %s13, 1
      %p44 = por %p42, %p43
      %p45 = scmp.ne.s32.totalorder %s37, %s40
      %p46 = scmp.eq.s32.totalorder %s13, 0
      %p47 = por %p45, %p46
      %p48 = scmp.ne.s32.totalorder %s37, %s40
      %p49 = scmp.eq.s32.totalorder %s18, 1
      %p50 = por %p48, %p49
      %p51 = scmp.ne.s32.totalorder %s40, %s41
      %p52 = scmp.eq.s32.totalorder %s18, 0
      %p53 = por %p51, %p52
      %p54 = scmp.ne.s32.totalorder %s40, %s41
      %p55 = scmp.eq.s32.totalorder %s19, 1
      %p56 = por %p54, %p55
      %p58 = scmp.ne.s32.totalorder %s41, %s57
      %p59 = scmp.eq.s32.totalorder %s19, 0
      %p60 = por %p58, %p59
      %s61 = sadd.s32 %s21, 1
      %s62 = sadd.s32 %s28, 1
      %s63 = ssub.s32 %s20, %s32
      %s64 = ssub.s32 %s61, %s62
      %s65 = sor.u32 %s63, %s64
      %p66 = scmp.eq.s32.totalorder %s65, 0
      %s68 = sadd.s32 %s67, 1
      %s69 = scalar_select %p66, %s67, %s68
      %p72 = pneg %p66
      %p73 = scmp.eq.s32.totalorder %s13, 1
      %p74 = por %p72, %p73
      %p75 = scmp.ne.s32.totalorder %s67, %s70
      %p76 = scmp.eq.s32.totalorder %s13, 0
      %p77 = por %p75, %p76
      %p78 = scmp.ne.s32.totalorder %s67, %s70
      %p79 = scmp.eq.s32.totalorder %s18, 1
      %p80 = por %p78, %p79
      %p81 = scmp.ne.s32.totalorder %s70, %s71
      %p82 = scmp.eq.s32.totalorder %s18, 0
      %p83 = por %p81, %p82
      %p84 = scmp.ne.s32.totalorder %s70, %s71
      %p85 = scmp.eq.s32.totalorder %s19, 1
      %p86 = por %p84, %p85
      %p88 = scmp.ne.s32.totalorder %s71, %s87
      %p89 = scmp.eq.s32.totalorder %s19, 0
      %p90 = por %p88, %p89
      %s92 = sadd.s32 %s91, 1
      %p95 = scmp.eq.s32.totalorder %s13, 1
      %p96 = scmp.ne.s32.totalorder %s91, %s93
      %p97 = scmp.eq.s32.totalorder %s13, 0
      %p98 = por %p96, %p97
      %p99 = scmp.ne.s32.totalorder %s91, %s93
      %p100 = scmp.eq.s32.totalorder %s18, 1
      %p101 = por %p99, %p100
      %p102 = scmp.ne.s32.totalorder %s93, %s94
      %p103 = scmp.eq.s32.totalorder %s18, 0
      %p104 = por %p102, %p103
      %p105 = scmp.ne.s32.totalorder %s93, %s94
      %p106 = scmp.eq.s32.totalorder %s19, 1
      %p107 = por %p105, %p106
      %p109 = scmp.ne.s32.totalorder %s94, %s108
      %p110 = scmp.eq.s32.totalorder %s19, 0
      %p111 = por %p109, %p110
      %s113 = sadd.s32 %s112, 1
      %p116 = scmp.eq.s32.totalorder %s13, 1
      %p117 = scmp.ne.s32.totalorder %s112, %s114
      %p118 = scmp.eq.s32.totalorder %s13, 0
      %p119 = por %p117, %p118
      %p120 = scmp.ne.s32.totalorder %s112, %s114
      %p121 = scmp.eq.s32.totalorder %s18, 1
      %p122 = por %p120, %p121
      %p123 = scmp.ne.s32.totalorder %s114, %s115
      %p124 = scmp.eq.s32.totalorder %s18, 0
      %p125 = por %p123, %p124
      %p126 = scmp.ne.s32.totalorder %s114, %s115
      %p127 = scmp.eq.s32.totalorder %s19, 1
      %p128 = por %p126, %p127
      %p130 = scmp.ne.s32.totalorder %s115, %s129
      %p131 = scmp.eq.s32.totalorder %s19, 0
      %p132 = por %p130, %p131
      %s133 = ssub.s32 %s20, %s32
      %s134 = ssub.s32 %s21, %s28
      %s135 = sor.u32 %s133, %s134
      %p136 = scmp.eq.s32.totalorder %s135, 0
      %s138 = sadd.s32 %s137, 1
      %s139 = scalar_select %p136, %s137, %s138
      %p142 = pneg %p136
      %p143 = scmp.eq.s32.totalorder %s13, 1
      %p144 = por %p142, %p143
      %p145 = scmp.ne.s32.totalorder %s137, %s140
      %p146 = scmp.eq.s32.totalorder %s13, 0
      %p147 = por %p145, %p146
      %p148 = scmp.ne.s32.totalorder %s137, %s140
      %p149 = scmp.eq.s32.totalorder %s18, 1
      %p150 = por %p148, %p149
      %p151 = scmp.ne.s32.totalorder %s140, %s141
      %p152 = scmp.eq.s32.totalorder %s18, 0
      %p153 = por %p151, %p152
      %p154 = scmp.ne.s32.totalorder %s140, %s141
      %p155 = scmp.eq.s32.totalorder %s19, 1
      %p156 = por %p154, %p155
      %p158 = scmp.ne.s32.totalorder %s141, %s157
      %p159 = scmp.eq.s32.totalorder %s19, 0
      %p160 = por %p158, %p159
      %p161 = scmp.le.s32.totalorder 1, %s13
      %p162 = scmp.lt.s32.totalorder %s13, 3
      %p163 = pnand %p161, %p162
      %p164 = pneg %p163
      // Predicated region
      $region9: #{tpu_custom_call.1} parent=5 // pred_check
        _
      $region10: #{tpu_custom_call.1} parent=5 // pred_check_branch
        %166 = sbr.rel (%p163) target = $region12
      $region11: #{tpu_custom_call.1} parent=5 // pred_region
        %s167 = ssub.s32 %s13, 1
        // Predicated region
        $region13: #{tpu_custom_call.1} parent=11 // pred_check
          %p168 = pneg %p104
        $region14: #{tpu_custom_call.1} parent=11 // pred_check_branch
          %170 = sbr.rel (%p168) target = $region16
        $region15: #{tpu_custom_call.1} parent=11 // pred_region
          _
        $region16: #{tpu_custom_call.1} parent=11 // pred_fallthru
          _
        // Predicated region
        $region17: #{tpu_custom_call.1} parent=11 // pred_check
          %p171 = pneg %p125
        $region18: #{tpu_custom_call.1} parent=11 // pred_check_branch
          %173 = sbr.rel (%p171) target = $region20
        $region19: #{tpu_custom_call.1} parent=11 // pred_region
          _
        $region20: #{tpu_custom_call.1} parent=11 // pred_fallthru
          _
      $region12: #{tpu_custom_call.1} parent=5 // pred_fallthru
        _
      %p174 = scmp.lt.s32.totalorder %s13, 2
      // Predicated region
      $region21: #{tpu_custom_call.1} parent=5 // pred_check
        %p175 = pneg %p174
      $region22: #{tpu_custom_call.1} parent=5 // pred_check_branch
        %177 = sbr.rel (%p175) target = $region24
      $region23: #{tpu_custom_call.1} parent=5 // pred_region
        // Predicated region
        $region25: #{tpu_custom_call.1} parent=23 // pred_check
          %p178 = pneg %p47
        $region26: #{tpu_custom_call.1} parent=23 // pred_check_branch
          %180 = sbr.rel (%p178) target = $region28
        $region27: #{tpu_custom_call.1} parent=23 // pred_region
          %s181 = sand.u32 %s37, 1
          %s182 = sand.u32 %s37, 1
          %s183 = smul.addr %s182, 16
          %s184 = scalar_lea.vmem [#allocation2], %s183
          %s185 = smul.addr %s20, 4
          %s186 = sadd.s32 %s21, %s185
          %s187 = smul.addr %s186, 8
          %s188 = scalar_lea.vmem %s0, %s187
          // Predicated region
          $region29: #{tpu_custom_call.1} parent=27 // pred_check
            _
          $region30: #{tpu_custom_call.1} parent=27 // pred_check_branch
            %190 = sbr.rel (0) target = $region32
          $region31: #{tpu_custom_call.1} parent=27 // pred_region
            // Predicated region
            $region33: #{tpu_custom_call.1} parent=31 // pred_check
              _
            $region34: #{tpu_custom_call.1} parent=31 // pred_check_branch
              %192 = sbr.rel (0) target = $region36
            $region35: #{tpu_custom_call.1} parent=31 // pred_region
              // Predicated region
              $region48: #{tpu_custom_call.1} parent=35 // pred_check
                _
              $region49: #{tpu_custom_call.1} parent=35 // pred_check_branch
                %210 = sbr.rel (0) target = $region51
              $region50: #{tpu_custom_call.1} parent=35 // pred_region
                loop: start=0, step=1, limit=1
                $region52: #{tpu_custom_call.1} parent=50 // loop_pre_header
                  _
                $region53: #{tpu_custom_call.1} parent=50 // loop_header
                  %s212 = sphi 0, %s216
                  %p213 = scmp.ge.s32.totalorder %s212, 1
                  %s217 = sphi %s188, %s188
                  %s218 = sphi %s184, %s184
                $region54: #{tpu_custom_call.1} parent=50 // loop_header_branch
                  %215 = sbr.rel (%p213) target = $region58
                $region55: #{tpu_custom_call.1} parent=50 // loop_body
                  %v219 = vld [vmem:[%s217] sm:$0xff]
                  %220 = vst [vmem:[%s218] sm:$0xff] %v219
                  %v221 = vld [vmem:[%s217 + $0x10] sm:$0xff]
                  %222 = vst [vmem:[%s218 + $0x8] sm:$0xff] %v221
                $region56: #{tpu_custom_call.1} parent=50 // loop_footer
                  %s216 = sadd.s32 1, %s212
                $region57: #{tpu_custom_call.1} parent=50 // loop_footer_branch
                  %211 = sbr.rel target = $region53
                $region58: #{tpu_custom_call.1} parent=50 // loop_exit
                  _
              $region51: #{tpu_custom_call.1} parent=35 // pred_fallthru
                _
              // Predicated region
              $region59: #{tpu_custom_call.1} parent=35 // pred_check
                _
              $region60: #{tpu_custom_call.1} parent=35 // pred_check_branch
                %224 = sbr.rel target = $region62
              $region61: #{tpu_custom_call.1} parent=35 // pred_region
                _
              $region62: #{tpu_custom_call.1} parent=35 // pred_fallthru
                _
            $region36: #{tpu_custom_call.1} parent=31 // pred_fallthru
              _
            // Predicated region
            $region37: #{tpu_custom_call.1} parent=31 // pred_check
              _
            $region38: #{tpu_custom_call.1} parent=31 // pred_check_branch
              %194 = sbr.rel target = $region40
            $region39: #{tpu_custom_call.1} parent=31 // pred_region
              %s196 = ssub.s32 256, 1
              loop: start=0, step=1, limit=1
              $region41: #{tpu_custom_call.1} parent=39 // loop_pre_header
                _
              $region42: #{tpu_custom_call.1} parent=39 // loop_header
                %s198 = sphi 0, %s202
                %p199 = scmp.ge.s32.totalorder %s198, 1
                %s203 = sphi %s188, %s188
                %s204 = sphi %s184, %s184
              $region43: #{tpu_custom_call.1} parent=39 // loop_header_branch
                %201 = sbr.rel (%p199) target = $region47
              $region44: #{tpu_custom_call.1} parent=39 // loop_body
                %v205 = vld [vmem:[%s203] sm:%s196]
                %206 = vst [vmem:[%s204] sm:%s196] %v205
                %v207 = vld [vmem:[%s203 + $0x10] sm:%s196]
                %208 = vst [vmem:[%s204 + $0x8] sm:%s196] %v207
              $region45: #{tpu_custom_call.1} parent=39 // loop_footer
                %s202 = sadd.s32 1, %s198
              $region46: #{tpu_custom_call.1} parent=39 // loop_footer_branch
                %197 = sbr.rel target = $region42
              $region47: #{tpu_custom_call.1} parent=39 // loop_exit
                _
            $region40: #{tpu_custom_call.1} parent=31 // pred_fallthru
              _
          $region32: #{tpu_custom_call.1} parent=27 // pred_fallthru
            _
          %225 = vnop
        $region28: #{tpu_custom_call.1} parent=23 // pred_fallthru
          _
        // Predicated region
        $region63: #{tpu_custom_call.1} parent=23 // pred_check
          %p226 = pneg %p77
        $region64: #{tpu_custom_call.1} parent=23 // pred_check_branch
          %228 = sbr.rel (%p226) target = $region66
        $region65: #{tpu_custom_call.1} parent=23 // pred_region
          %s229 = sand.u32 %s67, 1
          %s230 = sand.u32 %s67, 1
          %s231 = smul.addr %s230, 16
          %s232 = scalar_lea.vmem [#allocation3], %s231
          %s233 = sadd.s32 %s21, 1
          %s234 = smul.addr %s20, 4
          %s235 = sadd.s32 %s233, %s234
          %s236 = smul.addr %s235, 8
          %s237 = scalar_lea.vmem %s1, %s236
          // Predicated region
          $region67: #{tpu_custom_call.1} parent=65 // pred_check
            _
          $region68: #{tpu_custom_call.1} parent=65 // pred_check_branch
            %239 = sbr.rel (0) target = $region70
          $region69: #{tpu_custom_call.1} parent=65 // pred_region
            // Predicated region
            $region71: #{tpu_custom_call.1} parent=69 // pred_check
              _
            $region72: #{tpu_custom_call.1} parent=69 // pred_check_branch
              %241 = sbr.rel (0) target = $region74
            $region73: #{tpu_custom_call.1} parent=69 // pred_region
              // Predicated region
              $region86: #{tpu_custom_call.1} parent=73 // pred_check
                _
              $region87: #{tpu_custom_call.1} parent=73 // pred_check_branch
                %259 = sbr.rel (0) target = $region89
              $region88: #{tpu_custom_call.1} parent=73 // pred_region
                loop: start=0, step=1, limit=1
                $region90: #{tpu_custom_call.1} parent=88 // loop_pre_header
                  _
                $region91: #{tpu_custom_call.1} parent=88 // loop_header
                  %s261 = sphi 0, %s265
                  %p262 = scmp.ge.s32.totalorder %s261, 1
                  %s266 = sphi %s237, %s237
                  %s267 = sphi %s232, %s232
                $region92: #{tpu_custom_call.1} parent=88 // loop_header_branch
                  %264 = sbr.rel (%p262) target = $region96
                $region93: #{tpu_custom_call.1} parent=88 // loop_body
                  %v268 = vld [vmem:[%s266] sm:$0xff]
                  %269 = vst [vmem:[%s267] sm:$0xff] %v268
                  %v270 = vld [vmem:[%s266 + $0x10] sm:$0xff]
                  %271 = vst [vmem:[%s267 + $0x8] sm:$0xff] %v270
                $region94: #{tpu_custom_call.1} parent=88 // loop_footer
                  %s265 = sadd.s32 1, %s261
                $region95: #{tpu_custom_call.1} parent=88 // loop_footer_branch
                  %260 = sbr.rel target = $region91
                $region96: #{tpu_custom_call.1} parent=88 // loop_exit
                  _
              $region89: #{tpu_custom_call.1} parent=73 // pred_fallthru
                _
              // Predicated region
              $region97: #{tpu_custom_call.1} parent=73 // pred_check
                _
              $region98: #{tpu_custom_call.1} parent=73 // pred_check_branch
                %273 = sbr.rel target = $region100
              $region99: #{tpu_custom_call.1} parent=73 // pred_region
                _
              $region100: #{tpu_custom_call.1} parent=73 // pred_fallthru
                _
            $region74: #{tpu_custom_call.1} parent=69 // pred_fallthru
              _
            // Predicated region
            $region75: #{tpu_custom_call.1} parent=69 // pred_check
              _
            $region76: #{tpu_custom_call.1} parent=69 // pred_check_branch
              %243 = sbr.rel target = $region78
            $region77: #{tpu_custom_call.1} parent=69 // pred_region
              %s245 = ssub.s32 256, 1
              loop: start=0, step=1, limit=1
              $region79: #{tpu_custom_call.1} parent=77 // loop_pre_header
                _
              $region80: #{tpu_custom_call.1} parent=77 // loop_header
                %s247 = sphi 0, %s251
                %p248 = scmp.ge.s32.totalorder %s247, 1
                %s252 = sphi %s237, %s237
                %s253 = sphi %s232, %s232
              $region81: #{tpu_custom_call.1} parent=77 // loop_header_branch
                %250 = sbr.rel (%p248) target = $region85
              $region82: #{tpu_custom_call.1} parent=77 // loop_body
                %v254 = vld [vmem:[%s252] sm:%s245]
                %255 = vst [vmem:[%s253] sm:%s245] %v254
                %v256 = vld [vmem:[%s252 + $0x10] sm:%s245]
                %257 = vst [vmem:[%s253 + $0x8] sm:%s245] %v256
              $region83: #{tpu_custom_call.1} parent=77 // loop_footer
                %s251 = sadd.s32 1, %s247
              $region84: #{tpu_custom_call.1} parent=77 // loop_footer_branch
                %246 = sbr.rel target = $region80
              $region85: #{tpu_custom_call.1} parent=77 // loop_exit
                _
            $region78: #{tpu_custom_call.1} parent=69 // pred_fallthru
              _
          $region70: #{tpu_custom_call.1} parent=65 // pred_fallthru
            _
          %274 = vnop
        $region66: #{tpu_custom_call.1} parent=23 // pred_fallthru
          _
      $region24: #{tpu_custom_call.1} parent=5 // pred_fallthru
        _
      %p275 = scmp.le.s32.totalorder 1, %s13
      %p276 = scmp.lt.s32.totalorder %s13, 3
      %p277 = pnand %p275, %p276
      %p278 = pneg %p277
      // Predicated region
      $region101: #{tpu_custom_call.1} parent=5 // pred_check
        _
      $region102: #{tpu_custom_call.1} parent=5 // pred_check_branch
        %280 = sbr.rel (%p277) target = $region104
      $region103: #{tpu_custom_call.1} parent=5 // pred_region
        %s281 = ssub.s32 %s13, 1
        %s282 = sand.u32 %s40, 1
        %s283 = sand.u32 %s40, 1
        %s284 = smul.addr %s283, 16
        %s285 = scalar_lea.vmem [#allocation2], %s284
        // Predicated region
        $region105: #{tpu_custom_call.1} parent=103 // pred_check
          %p286 = pneg %p53
        $region106: #{tpu_custom_call.1} parent=103 // pred_check_branch
          %288 = sbr.rel (%p286) target = $region108
        $region107: #{tpu_custom_call.1} parent=103 // pred_region
          _
        $region108: #{tpu_custom_call.1} parent=103 // pred_fallthru
          _
        %s289 = sand.u32 %s70, 1
        %s290 = sand.u32 %s70, 1
        %s291 = smul.addr %s290, 16
        %s292 = scalar_lea.vmem [#allocation3], %s291
        // Predicated region
        $region109: #{tpu_custom_call.1} parent=103 // pred_check
          %p293 = pneg %p83
        $region110: #{tpu_custom_call.1} parent=103 // pred_check_branch
          %295 = sbr.rel (%p293) target = $region112
        $region111: #{tpu_custom_call.1} parent=103 // pred_region
          _
        $region112: #{tpu_custom_call.1} parent=103 // pred_fallthru
          _
        %s296 = sand.u32 %s40, 1
        %s297 = sand.u32 %s40, 1
        %s298 = smul.addr %s297, 16
        %s299 = scalar_lea.vmem [#allocation2], %s298
        %p300 = pneg %p53
        %p301 = pneg %p50
        %s302 = sand.u32 %s70, 1
        %s303 = sand.u32 %s70, 1
        %s304 = smul.addr %s303, 16
        %s305 = scalar_lea.vmem [#allocation3], %s304
        %p306 = pneg %p83
        %p307 = pneg %p80
        %p308 = pneg %p104
        %p309 = pneg %p101
        %p310 = pneg %p125
        %p311 = pneg %p122
        %p312 = pneg %p153
        %p313 = pneg %p150
        %s314 = sand.u32 %s140, 1
        %s315 = scalar_lea.sflag [#allocation5], %s314
        %s316 = sand.u32 %s140, 1
        %s317 = smul.addr %s316, 16
        %s318 = scalar_lea.vmem [#allocation4], %s317
        %s319 = sadd.s32 %s23, 1
        %v320 = vld [vmem:[%s285] sm:$0xff]
        %v321 = vld [vmem:[%s285 + $0x8] sm:$0xff]
        %v322 = vld [vmem:[%s292] sm:$0xff]
        %v323 = vld [vmem:[%s292 + $0x8] sm:$0xff]
        %328 = vrot.lane.b32.xlu0 %v320, 127
        %v329 = vpop.permute.xlu0 %328
        %330 = vrot.lane.b32.xlu0 %v322, 127
        %v331 = vpop.permute.xlu0 %330
        %332 = vrot.lane.b32.xlu0 %v321, 127
        %v333 = vpop.permute.xlu0 %332
        %334 = vrot.lane.b32.xlu0 %v323, 127
        %v335 = vpop.permute.xlu0 %334
        %vm336 = vcmask 1039360
        %v337 = vsel %vm336, %v329, %v331
        %v338 = vsel %vm336, %v333, %v335
        %341 = vrot.lane.b32.xlu0 %v320, 126
        %v342 = vpop.permute.xlu0 %341
        %343 = vrot.lane.b32.xlu0 %v322, 126
        %v344 = vpop.permute.xlu0 %343
        %345 = vrot.lane.b32.xlu0 %v321, 126
        %v346 = vpop.permute.xlu0 %345
        %347 = vrot.lane.b32.xlu0 %v323, 126
        %v348 = vpop.permute.xlu0 %347
        %vm349 = vcmask 1031168
        %v350 = vsel %vm349, %v342, %v344
        %v351 = vsel %vm349, %v346, %v348
        %354 = vrot.lane.b32.xlu0 %v320, 125
        %v355 = vpop.permute.xlu0 %354
        %356 = vrot.lane.b32.xlu0 %v322, 125
        %v357 = vpop.permute.xlu0 %356
        %358 = vrot.lane.b32.xlu0 %v321, 125
        %v359 = vpop.permute.xlu0 %358
        %360 = vrot.lane.b32.xlu0 %v323, 125
        %v361 = vpop.permute.xlu0 %360
        %vm362 = vcmask 1022976
        %v363 = vsel %vm362, %v355, %v357
        %v364 = vsel %vm362, %v359, %v361
        %v367 = vld [vmem:[%s2] sm:$0xff]
        %v368 = vld [vmem:[%s2 + $0x8] sm:$0xff]
        %v369 = vld [vmem:[%s2 + $0x10] sm:$0xff]
        %v370 = vld [vmem:[%s2 + $0x18] sm:$0xff]
        %v371 = vld [vmem:[%s2 + $0x20] sm:$0xff]
        %v372 = vld [vmem:[%s2 + $0x28] sm:$0xff]
        %v373 = vld [vmem:[%s2 + $0x30] sm:$0xff]
        %v374 = vld [vmem:[%s2 + $0x38] sm:$0xff]
        %v375 = vld [vmem:[%s2 + $0x40] sm:$0xff]
        %v376 = vld [vmem:[%s2 + $0x48] sm:$0xff]
        %vm377 = vcmask 523264
        %v379 = vsel %vm377, %v367, 0
        %v382 = vsel %vm377, %v368, 0
        %v385 = vsel %vm377, %v369, 0
        %v388 = vsel %vm377, %v370, 0
        %v391 = vsel %vm377, %v371, 0
        %v394 = vsel %vm377, %v372, 0
        %v397 = vsel %vm377, %v373, 0
        %v400 = vsel %vm377, %v374, 0
        %v403 = vsel %vm377, %v375, 0
        %v406 = vsel %vm377, %v376, 0
        %408 = vmatpush.msra.mxu0 0.0
        %409 = vmatpush.msra.mxu0 0.0
        %410 = vmatpush.msra.mxu0 0.0
        %411 = vmatpush.msra.mxu0 0.0
        %412 = vmatpush.msra.mxu0 0.0
        %413 = vmatpush.msra.mxu0 0.0
        %414 = vmatpush.msra.mxu0 0.0
        %415 = vmatpush.msra.mxu0 0.0
        %416 = vmatpush.msra.mxu0 %v364
        %417 = vmatpush.msra.mxu0 %v363
        %418 = vmatpush.msra.mxu0 %v351
        %419 = vmatpush.msra.mxu0 %v350
        %420 = vmatpush.msra.mxu0 %v338
        %421 = vmatpush.msra.mxu0 %v337
        %422 = vmatpush.msra.mxu0 %v321
        %423 = vmatpush.msra.mxu0 %v320
        %424 = vmatmul.f32.gmra.mxu0 %v379
        %v425 = vpop.f32.mrf.mxu0
        %v426 = vadd.f32 0.0, %v425
        %427 = vmatmul.f32.gmra.mxu0 %v382
        %v428 = vpop.f32.mrf.mxu0
        %v429 = vadd.f32 0.0, %v428
        %430 = vmatmul.f32.gmra.mxu0 %v385
        %v431 = vpop.f32.mrf.mxu0
        %v432 = vadd.f32 0.0, %v431
        %433 = vmatmul.f32.gmra.mxu0 %v388
        %v434 = vpop.f32.mrf.mxu0
        %v435 = vadd.f32 0.0, %v434
        %436 = vmatmul.f32.gmra.mxu0 %v391
        %v437 = vpop.f32.mrf.mxu0
        %v438 = vadd.f32 0.0, %v437
        %439 = vmatmul.f32.gmra.mxu0 %v394
        %v440 = vpop.f32.mrf.mxu0
        %v441 = vadd.f32 0.0, %v440
        %442 = vmatmul.f32.gmra.mxu0 %v397
        %v443 = vpop.f32.mrf.mxu0
        %v444 = vadd.f32 0.0, %v443
        %445 = vmatmul.f32.gmra.mxu0 %v400
        %v446 = vpop.f32.mrf.mxu0
        %v447 = vadd.f32 0.0, %v446
        %448 = vmatmul.f32.gmra.mxu0 %v403
        %v449 = vpop.f32.mrf.mxu0
        %v450 = vadd.f32 0.0, %v449
        %451 = vmatmul.f32.gmra.mxu0 %v406
        %v452 = vpop.f32.mrf.mxu0
        %v453 = vadd.f32 0.0, %v452
        %454 = vdwg.mxu0
        %v455 = vmul.f32 %v426, %v426
        %v456 = vmul.f32 %v429, %v429
        %v457 = vmul.f32 %v432, %v432
        %v458 = vmul.f32 %v435, %v435
        %v459 = vmul.f32 %v438, %v438
        %v460 = vmul.f32 %v441, %v441
        %v461 = vmul.f32 %v444, %v444
        %v462 = vmul.f32 %v447, %v447
        %v463 = vmul.f32 %v450, %v450
        %v464 = vmul.f32 %v453, %v453
        %v465 = vadd.f32 %v455, %v460
        %v466 = vadd.f32 %v456, %v461
        %v467 = vadd.f32 %v457, %v462
        %v468 = vadd.f32 %v458, %v463
        %v469 = vadd.f32 %v459, %v464
        %v470 = vadd.f32 %v465, 1e-09
        %v471 = vadd.f32 %v466, 1e-09
        %v472 = vadd.f32 %v467, 1e-09
        %v473 = vadd.f32 %v468, 1e-09
        %v474 = vadd.f32 %v469, 1e-09
        %v475 = vrsqrt.pop %v470
        %v476 = vmul.f32 %v475, %v470
        %v477 = vmul.f32 %v476, %v475
        %v478 = vmul.f32 0.5, %v477
        %v479 = vsub.f32 1.5, %v478
        %v480 = vmul.f32 %v475, %v479
        %v481 = vmul.f32 %v470, %v480
        %vm482 = vcmp.eq.f32.partialorder %v470, inf
        %v483 = vsel %vm482, %v470, %v481
        %vm484 = vcmp.eq.f32.partialorder %v470, 0.0
        %v485 = vand.u32 %v470, 2147483648
        %v486 = vsel %vm484, %v485, %v483
        %v487 = vrsqrt.pop %v471
        %v488 = vmul.f32 %v487, %v471
        %v489 = vmul.f32 %v488, %v487
        %v490 = vmul.f32 0.5, %v489
        %v491 = vsub.f32 1.5, %v490
        %v492 = vmul.f32 %v487, %v491
        %v493 = vmul.f32 %v471, %v492
        %vm494 = vcmp.eq.f32.partialorder %v471, inf
        %v495 = vsel %vm494, %v471, %v493
        %vm496 = vcmp.eq.f32.partialorder %v471, 0.0
        %v497 = vand.u32 %v471, 2147483648
        %v498 = vsel %vm496, %v497, %v495
        %v499 = vrsqrt.pop %v472
        %v500 = vmul.f32 %v499, %v472
        %v501 = vmul.f32 %v500, %v499
        %v502 = vmul.f32 0.5, %v501
        %v503 = vsub.f32 1.5, %v502
        %v504 = vmul.f32 %v499, %v503
        %v505 = vmul.f32 %v472, %v504
        %vm506 = vcmp.eq.f32.partialorder %v472, inf
        %v507 = vsel %vm506, %v472, %v505
        %vm508 = vcmp.eq.f32.partialorder %v472, 0.0
        %v509 = vand.u32 %v472, 2147483648
        %v510 = vsel %vm508, %v509, %v507
        %v511 = vrsqrt.pop %v473
        %v512 = vmul.f32 %v511, %v473
        %v513 = vmul.f32 %v512, %v511
        %v514 = vmul.f32 0.5, %v513
        %v515 = vsub.f32 1.5, %v514
        %v516 = vmul.f32 %v511, %v515
        %v517 = vmul.f32 %v473, %v516
        %vm518 = vcmp.eq.f32.partialorder %v473, inf
        %v519 = vsel %vm518, %v473, %v517
        %vm520 = vcmp.eq.f32.partialorder %v473, 0.0
        %v521 = vand.u32 %v473, 2147483648
        %v522 = vsel %vm520, %v521, %v519
        %v523 = vrsqrt.pop %v474
        %v524 = vmul.f32 %v523, %v474
        %v525 = vmul.f32 %v524, %v523
        %v526 = vmul.f32 0.5, %v525
        %v527 = vsub.f32 1.5, %v526
        %v528 = vmul.f32 %v523, %v527
        %v529 = vmul.f32 %v474, %v528
        %vm530 = vcmp.eq.f32.partialorder %v474, inf
        %v531 = vsel %vm530, %v474, %v529
        %vm532 = vcmp.eq.f32.partialorder %v474, 0.0
        %v533 = vand.u32 %v474, 2147483648
        %v534 = vsel %vm532, %v533, %v531
        %v535 = vld [vmem:[%s3] sm:$0xff]
        %v536 = vld [vmem:[%s3 + $0x8] sm:$0xff]
        %vm537 = vcmask 326656
        %v539 = vsel %vm537, %v535, 0
        %v542 = vsel %vm537, %v536, 0
        %544 = vmatpush.msra.mxu0 0.0
        %545 = vmatpush.msra.mxu0 0.0
        %546 = vmatpush.msra.mxu0 0.0
        %547 = vmatpush.msra.mxu0 0.0
        %548 = vmatpush.msra.mxu0 0.0
        %549 = vmatpush.msra.mxu0 0.0
        %550 = vmatpush.msra.mxu0 0.0
        %551 = vmatpush.msra.mxu0 0.0
        %552 = vmatpush.msra.mxu0 0.0
        %553 = vmatpush.msra.mxu0 0.0
        %554 = vmatpush.msra.mxu0 0.0
        %555 = vmatpush.msra.mxu0 %v534
        %556 = vmatpush.msra.mxu0 %v522
        %557 = vmatpush.msra.mxu0 %v510
        %558 = vmatpush.msra.mxu0 %v498
        %559 = vmatpush.msra.mxu0 %v486
        %560 = vmatmul.f32.gmra.mxu0 %v539
        %v561 = vpop.f32.mrf.mxu0
        %v562 = vadd.f32 0.0, %v561
        %563 = vmatmul.f32.gmra.mxu0 %v542
        %v564 = vpop.f32.mrf.mxu0
        %v565 = vadd.f32 0.0, %v564
        %566 = vdwg.mxu0
        %v567 = vmax.f32 %v562, 1e-05
        %v568 = vmax.f32 %v565, 1e-05
        %v569 = vlog2.pop %v567
        %v570 = vmul.f32 %v569, 0.6931472
        %v571 = vlog2.pop %v568
        %v572 = vmul.f32 %v571, 0.6931472
        %v573 = vmul.f32 %v570, 0.4342945
        %v574 = vmul.f32 %v572, 0.4342945
        %575 = vst [vmem:[%s318] sm:$0xff] %v573
        %576 = vst [vmem:[%s318 + $0x8] sm:$0xff] %v574
        %s577 = sand.u32 %s140, 1
        %s578 = scalar_lea.sflag [#allocation5], %s577
        %s579 = sand.u32 %s140, 1
        %s580 = smul.addr %s579, 16
        %s581 = scalar_lea.vmem [#allocation4], %s580
        // Predicated region
        $region113: #{tpu_custom_call.1} parent=103 // pred_check
          %p582 = pneg %p150
        $region114: #{tpu_custom_call.1} parent=103 // pred_check_branch
          %584 = sbr.rel (%p582) target = $region116
        $region115: #{tpu_custom_call.1} parent=103 // pred_region
          %586 = vsyncadd %s578, 0
          %s587 = smul.addr %s22, 2
          %s588 = sadd.s32 %s23, %s587
          %s589 = smul.addr %s588, 8
          %s590 = scalar_lea.hbm %s4, %s589
          %s591 = sshll.u32 %s581, 4
          %s592 = int_to_ptr.vmem [resolvable:$true] %s591
          %s593 = sshll.u32 %s590, 4
          %s594 = int_to_ptr.hbm [resolvable:$true] %s593
          %599 = dma.vmem_to_hbm [thread:$0]  %s592, 256, %s594, %s578, 128, 128, 8
        $region116: #{tpu_custom_call.1} parent=103 // pred_fallthru
          _
      $region104: #{tpu_custom_call.1} parent=5 // pred_fallthru
        _
      %p600 = scmp.le.s32.totalorder 2, %s13
      // Predicated region
      $region117: #{tpu_custom_call.1} parent=5 // pred_check
        %p601 = pneg %p600
      $region118: #{tpu_custom_call.1} parent=5 // pred_check_branch
        %603 = sbr.rel (%p601) target = $region120
      $region119: #{tpu_custom_call.1} parent=5 // pred_region
        %s604 = ssub.s32 %s13, 2
        // Predicated region
        $region121: #{tpu_custom_call.1} parent=119 // pred_check
          %p605 = pneg %p156
        $region122: #{tpu_custom_call.1} parent=119 // pred_check_branch
          %607 = sbr.rel (%p605) target = $region124
        $region123: #{tpu_custom_call.1} parent=119 // pred_region
          %s608 = sand.u32 %s141, 1
          %s609 = scalar_lea.sflag [#allocation5], %s608
          %s610 = sand.u32 %s141, 1
          %s611 = smul.addr %s610, 16
          %s612 = scalar_lea.vmem [#allocation4], %s611
          %614 = dma.done %s609, 256
        $region124: #{tpu_custom_call.1} parent=119 // pred_fallthru
          _
      $region120: #{tpu_custom_call.1} parent=5 // pred_fallthru
        _
    $region6: #{tpu_custom_call.1} parent=1 // loop_footer
      %s17 = sadd.s32 1, %s13
    $region7: #{tpu_custom_call.1} parent=1 // loop_footer_branch
      %12 = sbr.rel target = $region3
    $region8: #{tpu_custom_call.1} parent=1 // loop_exit
      _
    %615 = vsyncpa [#allocation5], 1
    %s616 = scalar_lea.sflag [#allocation5], 1
    %617 = vsyncpa %s616, 1

</llo_original>
